<compile_context>
chip_gen: v5e
topology: v5e:2x2
jax: 0.10.0
libtpu: 0.0.40
codegen_flags: <defaults>
</compile_context>

<pallas_src>
import jax
import jax.numpy as jnp
from jax.experimental import pallas as pl
from jax.experimental.pallas import tpu as pltpu


def _round_up(x, m):
    return ((x + m - 1) // m) * m


def _critic_mlp_kernel(x_ref, w1_ref, b1_ref, w2_ref, b2_ref,
                       w3_ref, b3_ref, wo_ref, bo_ref, out_ref):
    # x arrives f32 / unpadded; cast to bf16 in-kernel (no separate XLA pass).
    x = x_ref[...].astype(jnp.bfloat16)
    # hidden layer 1: bf16 matmul, f32 accumulate, bias in f32, ReLU on bf16
    h = jnp.dot(x, w1_ref[...], preferred_element_type=jnp.float32)
    h = jnp.maximum((h + b1_ref[...]).astype(jnp.bfloat16), 0.0)
    # hidden layer 2
    h = jnp.dot(h, w2_ref[...], preferred_element_type=jnp.float32)
    h = jnp.maximum((h + b2_ref[...]).astype(jnp.bfloat16), 0.0)
    # hidden layer 3
    h = jnp.dot(h, w3_ref[...], preferred_element_type=jnp.float32)
    h = jnp.maximum((h + b3_ref[...]).astype(jnp.bfloat16), 0.0)
    # output layer (no activation) -> Q-value, 128-lane-padded f32 output
    out_ref[...] = (jnp.dot(h, wo_ref[...], preferred_element_type=jnp.float32)
                    + bo_ref[...])


def prepare_critic_params(params, *, o_pad=128):
    """One-time preprocessing: cast weights to bf16, pad only the output layer.

    Do this once per parameter set, NOT per forward call.
    params: w1 (d_in, W), b1 (W,), w2/w3 (W, W), b2/b3 (W,), wo (W, 1), bo (1,)
    """
    d_in, W = params["w1"].shape

    w1 = params["w1"].astype(jnp.bfloat16)            # ragged K is fine (masked)
    w2 = params["w2"].astype(jnp.bfloat16)
    w3 = params["w3"].astype(jnp.bfloat16)
    # Pad the output projection to 128 lanes -> unmasked vector stores.
    wo = jnp.zeros((W, o_pad), jnp.bfloat16).at[:, :1].set(
        params["wo"].astype(jnp.bfloat16))

    b1 = params["b1"].reshape(1, W).astype(jnp.float32)
    b2 = params["b2"].reshape(1, W).astype(jnp.float32)
    b3 = params["b3"].reshape(1, W).astype(jnp.float32)
    bo = jnp.zeros((1, o_pad), jnp.float32).at[:, :1].set(
        params["bo"].reshape(1, 1).astype(jnp.float32))

    return dict(w1=w1, b1=b1, w2=w2, b2=b2, w3=w3, b3=b3, wo=wo, bo=bo,
                d_in=d_in, o_pad=o_pad, width=W)


def critic_net_forward(x, prep, *, tile_b=1024):
    """CriticNet forward pass. x: (B, dim_state + dim_act) f32 -> (B, 1) f32."""
    B, d_in = x.shape
    assert d_in == prep["d_in"], "feature dim mismatch with prepared params"
    W, O = prep["width"], prep["o_pad"]

    # Tile selection:
    #   * >= 2 tiles whenever B allows it, so v7x's two TCs both get batch work.
    #   * tb derived from B -> at most 7 padded rows in the last tile.
    #   * tile_b=1024 keeps tiles large enough to amortize ~0.35us/step.
    n_tiles = max(2, pl.cdiv(B, tile_b))
    tb = _round_up(max(1, pl.cdiv(B, n_tiles)), 8)
    num_tiles = pl.cdiv(B, tb)

    in_specs = [
        pl.BlockSpec((tb, d_in), lambda i: (i, 0)),   # x: streamed per tile (f32)
        pl.BlockSpec((d_in, W), lambda i: (0, 0)),    # w1: VMEM-resident
        pl.BlockSpec((1, W), lambda i: (0, 0)),       # b1
        pl.BlockSpec((W, W), lambda i: (0, 0)),       # w2
        pl.BlockSpec((1, W), lambda i: (0, 0)),       # b2
        pl.BlockSpec((W, W), lambda i: (0, 0)),       # w3
        pl.BlockSpec((1, W), lambda i: (0, 0)),       # b3
        pl.BlockSpec((W, O), lambda i: (0, 0)),       # wo (128-lane padded)
        pl.BlockSpec((1, O), lambda i: (0, 0)),       # bo
    ]

    out_padded = pl.pallas_call(
        _critic_mlp_kernel,
        out_shape=jax.ShapeDtypeStruct((B, O), jnp.float32),
        grid=(num_tiles,),
        in_specs=in_specs,
        out_specs=pl.BlockSpec((tb, O), lambda i: (i, 0)),
        compiler_params=pltpu.CompilerParams(
            dimension_semantics=("parallel",),       # batch tiles shard on v7x's 2 TCs
            vmem_limit_bytes=32 * 1024 * 1024,       # safe on v5e/v6e/v7x
        ),
    )(x, prep["w1"], prep["b1"], prep["w2"], prep["b2"],
      prep["w3"], prep["b3"], prep["wo"], prep["bo"])

    return out_padded[:, :1]


def _init_linear(key, fan_in, fan_out):
    """Deterministic init mimicking torch.nn.Linear defaults (uniform +-1/sqrt(fan_in))."""
    kw, kb = jax.random.split(key)
    bound = 1.0 / jnp.sqrt(jnp.float32(fan_in))
    w = jax.random.uniform(kw, (fan_in, fan_out), jnp.float32, -bound, bound)
    b = jax.random.uniform(kb, (fan_out,), jnp.float32, -bound, bound)
    return w, b


def make_critic_params(key, dim_state, dim_act, depth=3, width=256):
    assert depth == 3, "kernel is written for the default depth=3"
    d_in = dim_state + dim_act
    k1, k2, k3, k4 = jax.random.split(key, 4)
    w1, b1 = _init_linear(k1, d_in, width)
    w2, b2 = _init_linear(k2, width, width)
    w3, b3 = _init_linear(k3, width, width)
    wo, bo = _init_linear(k4, width, 1)
    return dict(w1=w1, b1=b1, w2=w2, b2=b2, w3=w3, b3=b3, wo=wo, bo=bo)


def _reference_forward_f32(x, p):
    h = jnp.maximum(x @ p["w1"] + p["b1"], 0.0)
    h = jnp.maximum(h @ p["w2"] + p["b2"], 0.0)
    h = jnp.maximum(h @ p["w3"] + p["b3"], 0.0)
    return h @ p["wo"] + p["bo"]


def _reference_forward_bf16(x, p):
    def mm(a, w):
        return jnp.dot(a.astype(jnp.bfloat16), w.astype(jnp.bfloat16),
                       preferred_element_type=jnp.float32)
    h = jnp.maximum(mm(x, p["w1"]) + p["b1"], 0.0)
    h = jnp.maximum(mm(h, p["w2"]) + p["b2"], 0.0)
    h = jnp.maximum(mm(h, p["w3"]) + p["b3"], 0.0)
    return mm(h, p["wo"]) + p["bo"]


if __name__ == "__main__":
    # Small, deterministic problem: dim_state=17, dim_act=6 (d_in=23),
    # batch=64, hidden width=256 (module default; ideal MXU granule on v6e/v7x).
    dim_state, dim_act = 17, 6
    batch, width = 64, 256

    key = jax.random.PRNGKey(0)
    kx, kp = jax.random.split(key)

    x = jax.random.normal(kx, (batch, dim_state + dim_act), jnp.float32)
    params = make_critic_params(kp, dim_state, dim_act, depth=3, width=width)

    prep = prepare_critic_params(params)          # one-time bf16 cast / out padding
    q = critic_net_forward(x, prep)
    q = jax.block_until_ready(q)

    assert q.shape == (batch, 1)
    assert bool(jnp.all(jnp.isfinite(q)))

    # Tight check vs. a bf16-matmul / f32-accumulate reference (same arithmetic).
    q_bf16_ref = _reference_forward_bf16(x, params)
    assert jnp.allclose(q, q_bf16_ref, atol=2e-2, rtol=2e-2)

    # Loose check vs. the pure-f32 PyTorch-equivalent math.
    q_f32_ref = _reference_forward_f32(x, params)
    assert jnp.allclose(q, q_f32_ref, atol=1e-1, rtol=1e-1)

    print("KERNEL_OK")
</pallas_src>

<mosaic_0001>
module attributes {stable_mosaic.version = 11 : i64} {
  func.func @_critic_mlp_kernel(%arg0: i32, %arg1: memref<32x23xf32, #tpu.memory_space<vmem>>, %arg2: memref<23x256xbf16, #tpu.memory_space<vmem>>, %arg3: memref<1x256xf32, #tpu.memory_space<vmem>>, %arg4: memref<256x256xbf16, #tpu.memory_space<vmem>>, %arg5: memref<1x256xf32, #tpu.memory_space<vmem>>, %arg6: memref<256x256xbf16, #tpu.memory_space<vmem>>, %arg7: memref<1x256xf32, #tpu.memory_space<vmem>>, %arg8: memref<256x128xbf16, #tpu.memory_space<vmem>>, %arg9: memref<1x128xf32, #tpu.memory_space<vmem>>, %arg10: memref<32x128xf32, #tpu.memory_space<vmem>>) attributes {dimension_semantics = [#tpu.dimension_semantics<parallel>], iteration_bounds = array<i64: 2>, scalar_prefetch = 0 : i64, scratch_operands = 0 : i64, tpu.core_type = #tpu.core_type<tc>, window_params = [{transform_indices = @transform_0, window_bounds = array<i64: 32, 23>}, {pipeline_mode = #tpu.pipeline_mode<synchronous>, transform_indices = @transform_1, window_bounds = array<i64: 23, 256>}, {pipeline_mode = #tpu.pipeline_mode<synchronous>, transform_indices = @transform_2, window_bounds = array<i64: 1, 256>}, {pipeline_mode = #tpu.pipeline_mode<synchronous>, transform_indices = @transform_3, window_bounds = array<i64: 256, 256>}, {pipeline_mode = #tpu.pipeline_mode<synchronous>, transform_indices = @transform_4, window_bounds = array<i64: 1, 256>}, {pipeline_mode = #tpu.pipeline_mode<synchronous>, transform_indices = @transform_5, window_bounds = array<i64: 256, 256>}, {pipeline_mode = #tpu.pipeline_mode<synchronous>, transform_indices = @transform_6, window_bounds = array<i64: 1, 256>}, {pipeline_mode = #tpu.pipeline_mode<synchronous>, transform_indices = @transform_7, window_bounds = array<i64: 256, 128>}, {pipeline_mode = #tpu.pipeline_mode<synchronous>, transform_indices = @transform_8, window_bounds = array<i64: 1, 128>}, {transform_indices = @transform_9, window_bounds = array<i64: 32, 128>}]} {
    %c0 = arith.constant 0 : index
    %c0_0 = arith.constant 0 : index
    %0 = vector.load %arg1[%c0, %c0_0] : memref<32x23xf32, #tpu.memory_space<vmem>>, vector<32x23xf32>
    %1 = arith.truncf %0 : vector<32x23xf32> to vector<32x23xbf16>
    %c0_1 = arith.constant 0 : index
    %c0_2 = arith.constant 0 : index
    %2 = vector.load %arg2[%c0_1, %c0_2] : memref<23x256xbf16, #tpu.memory_space<vmem>>, vector<23x256xbf16>
    %cst = arith.constant dense<0.000000e+00> : vector<32x256xf32>
    %3 = tpu.matmul %1, %2, %cst {dimension_numbers = #tpu.dot_dimension_numbers<[1], [0], [0], [1], [0, 0, 1, 1], [], []>} : vector<32x23xbf16>, vector<23x256xbf16>, vector<32x256xf32> -> vector<32x256xf32>
    %c0_3 = arith.constant 0 : index
    %c0_4 = arith.constant 0 : index
    %4 = vector.load %arg3[%c0_3, %c0_4] : memref<1x256xf32, #tpu.memory_space<vmem>>, vector<1x256xf32>
    %5 = vector.broadcast %4 : vector<1x256xf32> to vector<32x256xf32>
    %6 = arith.addf %3, %5 : vector<32x256xf32>
    %7 = arith.truncf %6 : vector<32x256xf32> to vector<32x256xbf16>
    %cst_5 = arith.constant 0.000000e+00 : bf16
    %8 = vector.broadcast %cst_5 : bf16 to vector<32x256xbf16>
    %9 = arith.maximumf %7, %8 : vector<32x256xbf16>
    %c0_6 = arith.constant 0 : index
    %c0_7 = arith.constant 0 : index
    %10 = vector.load %arg4[%c0_6, %c0_7] : memref<256x256xbf16, #tpu.memory_space<vmem>>, vector<256x256xbf16>
    %cst_8 = arith.constant dense<0.000000e+00> : vector<32x256xf32>
    %11 = tpu.matmul %9, %10, %cst_8 {dimension_numbers = #tpu.dot_dimension_numbers<[1], [0], [0], [1], [0, 0, 1, 1], [], []>} : vector<32x256xbf16>, vector<256x256xbf16>, vector<32x256xf32> -> vector<32x256xf32>
    %c0_9 = arith.constant 0 : index
    %c0_10 = arith.constant 0 : index
    %12 = vector.load %arg5[%c0_9, %c0_10] : memref<1x256xf32, #tpu.memory_space<vmem>>, vector<1x256xf32>
    %13 = vector.broadcast %12 : vector<1x256xf32> to vector<32x256xf32>
    %14 = arith.addf %11, %13 : vector<32x256xf32>
    %15 = arith.truncf %14 : vector<32x256xf32> to vector<32x256xbf16>
    %cst_11 = arith.constant 0.000000e+00 : bf16
    %16 = vector.broadcast %cst_11 : bf16 to vector<32x256xbf16>
    %17 = arith.maximumf %15, %16 : vector<32x256xbf16>
    %c0_12 = arith.constant 0 : index
    %c0_13 = arith.constant 0 : index
    %18 = vector.load %arg6[%c0_12, %c0_13] : memref<256x256xbf16, #tpu.memory_space<vmem>>, vector<256x256xbf16>
    %cst_14 = arith.constant dense<0.000000e+00> : vector<32x256xf32>
    %19 = tpu.matmul %17, %18, %cst_14 {dimension_numbers = #tpu.dot_dimension_numbers<[1], [0], [0], [1], [0, 0, 1, 1], [], []>} : vector<32x256xbf16>, vector<256x256xbf16>, vector<32x256xf32> -> vector<32x256xf32>
    %c0_15 = arith.constant 0 : index
    %c0_16 = arith.constant 0 : index
    %20 = vector.load %arg7[%c0_15, %c0_16] : memref<1x256xf32, #tpu.memory_space<vmem>>, vector<1x256xf32>
    %21 = vector.broadcast %20 : vector<1x256xf32> to vector<32x256xf32>
    %22 = arith.addf %19, %21 : vector<32x256xf32>
    %23 = arith.truncf %22 : vector<32x256xf32> to vector<32x256xbf16>
    %cst_17 = arith.constant 0.000000e+00 : bf16
    %24 = vector.broadcast %cst_17 : bf16 to vector<32x256xbf16>
    %25 = arith.maximumf %23, %24 : vector<32x256xbf16>
    %c0_18 = arith.constant 0 : index
    %c0_19 = arith.constant 0 : index
    %26 = vector.load %arg8[%c0_18, %c0_19] : memref<256x128xbf16, #tpu.memory_space<vmem>>, vector<256x128xbf16>
    %cst_20 = arith.constant dense<0.000000e+00> : vector<32x128xf32>
    %27 = tpu.matmul %25, %26, %cst_20 {dimension_numbers = #tpu.dot_dimension_numbers<[1], [0], [0], [1], [0, 0, 1, 1], [], []>} : vector<32x256xbf16>, vector<256x128xbf16>, vector<32x128xf32> -> vector<32x128xf32>
    %c0_21 = arith.constant 0 : index
    %c0_22 = arith.constant 0 : index
    %28 = vector.load %arg9[%c0_21, %c0_22] : memref<1x128xf32, #tpu.memory_space<vmem>>, vector<1x128xf32>
    %29 = vector.broadcast %28 : vector<1x128xf32> to vector<32x128xf32>
    %30 = arith.addf %27, %29 : vector<32x128xf32>
    %c0_23 = arith.constant 0 : index
    %c0_24 = arith.constant 0 : index
    %31 = vector.load %arg10[%c0_23, %c0_24] : memref<32x128xf32, #tpu.memory_space<vmem>>, vector<32x128xf32>
    tpu.vector_store %arg10[%c0_23, %c0_24], %30 {strides = array<i32>} : memref<32x128xf32, #tpu.memory_space<vmem>>, vector<32x128xf32>,
    return
  }
  func.func @transform_0(%arg0: i32) -> (i32, i32) {
    %c0_i32 = arith.constant 0 : i32
    %c0_i32_0 = arith.constant 0 : i32
    return %arg0, %c0_i32 : i32, i32
  }
  func.func @transform_1(%arg0: i32) -> (i32, i32) {
    %c0_i32 = arith.constant 0 : i32
    %c0_i32_0 = arith.constant 0 : i32
    %c0_i32_1 = arith.constant 0 : i32
    return %c0_i32, %c0_i32_0 : i32, i32
  }
  func.func @transform_2(%arg0: i32) -> (i32, i32) {
    %c0_i32 = arith.constant 0 : i32
    %c0_i32_0 = arith.constant 0 : i32
    %c0_i32_1 = arith.constant 0 : i32
    return %c0_i32, %c0_i32_0 : i32, i32
  }
  func.func @transform_3(%arg0: i32) -> (i32, i32) {
    %c0_i32 = arith.constant 0 : i32
    %c0_i32_0 = arith.constant 0 : i32
    %c0_i32_1 = arith.constant 0 : i32
    return %c0_i32, %c0_i32_0 : i32, i32
  }
  func.func @transform_4(%arg0: i32) -> (i32, i32) {
    %c0_i32 = arith.constant 0 : i32
    %c0_i32_0 = arith.constant 0 : i32
    %c0_i32_1 = arith.constant 0 : i32
    return %c0_i32, %c0_i32_0 : i32, i32
  }
  func.func @transform_5(%arg0: i32) -> (i32, i32) {
    %c0_i32 = arith.constant 0 : i32
    %c0_i32_0 = arith.constant 0 : i32
    %c0_i32_1 = arith.constant 0 : i32
    return %c0_i32, %c0_i32_0 : i32, i32
  }
  func.func @transform_6(%arg0: i32) -> (i32, i32) {
    %c0_i32 = arith.constant 0 : i32
    %c0_i32_0 = arith.constant 0 : i32
    %c0_i32_1 = arith.constant 0 : i32
    return %c0_i32, %c0_i32_0 : i32, i32
  }
  func.func @transform_7(%arg0: i32) -> (i32, i32) {
    %c0_i32 = arith.constant 0 : i32
    %c0_i32_0 = arith.constant 0 : i32
    %c0_i32_1 = arith.constant 0 : i32
    return %c0_i32, %c0_i32_0 : i32, i32
  }
  func.func @transform_8(%arg0: i32) -> (i32, i32) {
    %c0_i32 = arith.constant 0 : i32
    %c0_i32_0 = arith.constant 0 : i32
    %c0_i32_1 = arith.constant 0 : i32
    return %c0_i32, %c0_i32_0 : i32, i32
  }
  func.func @transform_9(%arg0: i32) -> (i32, i32) {
    %c0_i32 = arith.constant 0 : i32
    %c0_i32_0 = arith.constant 0 : i32
    return %arg0, %c0_i32 : i32, i32
  }
}

</mosaic_0001>

<llo_original>
// kernel: tpu_custom_call.1
$region0: #{tpu_custom_call.1}
  #allocation0 [shape = 'u32[]', space=smem, size = 0x4, offset = 0x4, fixed_abs, tag = 'smem constant byte address 0x4 - core index']
  #allocation1 [shape = 'u32[72,128]{1,0:T(1,128)}', space=vmem, size = 0x9000, scoped, tag = 'internal scratch']
  %s0 = inlined_call_operand.vmem [shape: f32[64,23], index: 0, kind: input, shape index: {}]
  %s1 = inlined_call_operand.vmem [shape: bf16[23,256], index: 1, kind: input, shape index: {}]
  %s2 = inlined_call_operand.vmem [shape: f32[1,256], index: 2, kind: input, shape index: {}]
  %s3 = inlined_call_operand.hbm [shape: bf16[256,256], index: 3, kind: input, shape index: {}]
  %s4 = inlined_call_operand.vmem [shape: f32[1,256], index: 4, kind: input, shape index: {}]
  %s5 = inlined_call_operand.hbm [shape: bf16[256,256], index: 5, kind: input, shape index: {}]
  %s6 = inlined_call_operand.vmem [shape: f32[1,256], index: 6, kind: input, shape index: {}]
  %s7 = inlined_call_operand.hbm [shape: bf16[256,128], index: 7, kind: input, shape index: {}]
  %s8 = inlined_call_operand.vmem [shape: f32[1,128], index: 8, kind: input, shape index: {}]
  %s9 = inlined_call_operand.hbm [shape: f32[64,128], index: 9, kind: output, shape index: {}]
  %s10 = sld [smem:[#allocation0]]
  $region81: #{tpu_custom_call.1} parent=0
    _
  %s12 = ssub.s32 1, %s10
  %s13 = scalar_select 0, %s12, %s10
  $region1: #{tpu_custom_call.1} parent=0
    #allocation2 [shape = 'u8[131072]{0}', space=vmem, size = 0x20000, scoped, tag = 'input window, operand 3, single buffered']
    #allocation3 [shape = 's32[2]{0}', space=sflag, size = 0x8, scoped, tag = 'scoped memory for tpu_custom_call.1']
    #allocation4 [shape = 's32[2]{0}', space=sflag, size = 0x8, scoped, tag = 'scoped memory for tpu_custom_call.1']
    #allocation5 [shape = 'u8[131072]{0}', space=vmem, size = 0x20000, scoped, tag = 'input window, operand 5, single buffered']
    #allocation6 [shape = 's32[1]{0}', space=sflag, size = 0x4, scoped, tag = 'scoped memory for tpu_custom_call.1']
    #allocation7 [shape = 'u8[65536]{0}', space=vmem, size = 0x10000, scoped, tag = 'input window, operand 7, single buffered']
    #allocation8 [shape = 'u8[32768]{0}', space=vmem, size = 0x8000, scoped, tag = 'output window, operand 0']
    %14 = vsyncpa [#allocation3], 0
    %15 = vsyncpa [#allocation6], 0
    %16 = vsyncpa [#allocation4], 0
    %s17 = scalar_lea.sflag [#allocation4], 1
    %18 = vsyncpa %s17, 0
    loop: start=0, step=1, limit=4
    $region2: #{tpu_custom_call.1} parent=1 // loop_pre_header
      _
    $region3: #{tpu_custom_call.1} parent=1 // loop_header
      %s20 = sphi 0, %s24
      %p21 = scmp.ge.s32.totalorder %s20, 4
      %s30 = sphi 0, %s32
      %s33 = sphi 0, %s30
      %s34 = sphi 0, %s33
      %s50 = sphi 0, %s34
      %s54 = sphi 0, %s54
      %s56 = sphi 0, %s54
      %s57 = sphi 0, %s56
      %s71 = sphi 0, %s57
      %s75 = sphi 0, %s75
      %s77 = sphi 0, %s75
      %s78 = sphi 0, %s77
      %s92 = sphi 0, %s78
      %s96 = sphi 0, %s96
      %s98 = sphi 0, %s96
      %s99 = sphi 0, %s98
      %s113 = sphi 0, %s99
      %s117 = sphi 0, %s117
      %s119 = sphi 0, %s117
      %s120 = sphi 0, %s119
      %s134 = sphi 0, %s120
      %s138 = sphi 0, %s138
      %s140 = sphi 0, %s138
      %s141 = sphi 0, %s140
      %s155 = sphi 0, %s141
      %s159 = sphi 0, %s159
      %s161 = sphi 0, %s159
      %s162 = sphi 0, %s161
      %s176 = sphi 0, %s162
      %s180 = sphi 0, %s180
      %s182 = sphi 0, %s180
      %s183 = sphi 0, %s182
      %s197 = sphi 0, %s183
      %s201 = sphi 0, %s201
      %s203 = sphi 0, %s201
      %s204 = sphi 0, %s203
      %s218 = sphi 0, %s204
      %s224 = sphi 0, %s226
      %s227 = sphi 0, %s224
      %s228 = sphi 0, %s227
      %s244 = sphi 0, %s228
    $region4: #{tpu_custom_call.1} parent=1 // loop_header_branch
      %23 = sbr.rel (%p21) target = $region8
    $region5: #{tpu_custom_call.1} parent=1 // loop_body
      %s25 = ssub.s32 %s20, 1
      %s26 = ssub.s32 %s20, 2
      %s27 = sadd.s32 %s20, 1
      %s28 = ssub.s32 %s20, %s27
      %p29 = scmp.eq.s32.totalorder %s28, 0
      %s31 = sadd.s32 %s30, 1
      %s32 = scalar_select %p29, %s30, %s31
      %p35 = pneg %p29
      %p36 = scmp.eq.s32.totalorder %s20, 1
      %p37 = por %p35, %p36
      %p38 = scmp.ne.s32.totalorder %s30, %s33
      %p39 = scmp.eq.s32.totalorder %s20, 0
      %p40 = por %p38, %p39
      %p41 = scmp.ne.s32.totalorder %s30, %s33
      %p42 = scmp.eq.s32.totalorder %s25, 1
      %p43 = por %p41, %p42
      %p44 = scmp.ne.s32.totalorder %s33, %s34
      %p45 = scmp.eq.s32.totalorder %s25, 0
      %p46 = por %p44, %p45
      %p47 = scmp.ne.s32.totalorder %s33, %s34
      %p48 = scmp.eq.s32.totalorder %s26, 1
      %p49 = por %p47, %p48
      %p51 = scmp.ne.s32.totalorder %s34, %s50
      %p52 = scmp.eq.s32.totalorder %s26, 0
      %p53 = por %p51, %p52
      %s55 = sadd.s32 %s54, 1
      %p58 = scmp.eq.s32.totalorder %s20, 1
      %p59 = scmp.ne.s32.totalorder %s54, %s56
      %p60 = scmp.eq.s32.totalorder %s20, 0
      %p61 = por %p59, %p60
      %p62 = scmp.ne.s32.totalorder %s54, %s56
      %p63 = scmp.eq.s32.totalorder %s25, 1
      %p64 = por %p62, %p63
      %p65 = scmp.ne.s32.totalorder %s56, %s57
      %p66 = scmp.eq.s32.totalorder %s25, 0
      %p67 = por %p65, %p66
      %p68 = scmp.ne.s32.totalorder %s56, %s57
      %p69 = scmp.eq.s32.totalorder %s26, 1
      %p70 = por %p68, %p69
      %p72 = scmp.ne.s32.totalorder %s57, %s71
      %p73 = scmp.eq.s32.totalorder %s26, 0
      %p74 = por %p72, %p73
      %s76 = sadd.s32 %s75, 1
      %p79 = scmp.eq.s32.totalorder %s20, 1
      %p80 = scmp.ne.s32.totalorder %s75, %s77
      %p81 = scmp.eq.s32.totalorder %s20, 0
      %p82 = por %p80, %p81
      %p83 = scmp.ne.s32.totalorder %s75, %s77
      %p84 = scmp.eq.s32.totalorder %s25, 1
      %p85 = por %p83, %p84
      %p86 = scmp.ne.s32.totalorder %s77, %s78
      %p87 = scmp.eq.s32.totalorder %s25, 0
      %p88 = por %p86, %p87
      %p89 = scmp.ne.s32.totalorder %s77, %s78
      %p90 = scmp.eq.s32.totalorder %s26, 1
      %p91 = por %p89, %p90
      %p93 = scmp.ne.s32.totalorder %s78, %s92
      %p94 = scmp.eq.s32.totalorder %s26, 0
      %p95 = por %p93, %p94
      %s97 = sadd.s32 %s96, 1
      %p100 = scmp.eq.s32.totalorder %s20, 1
      %p101 = scmp.ne.s32.totalorder %s96, %s98
      %p102 = scmp.eq.s32.totalorder %s20, 0
      %p103 = por %p101, %p102
      %p104 = scmp.ne.s32.totalorder %s96, %s98
      %p105 = scmp.eq.s32.totalorder %s25, 1
      %p106 = por %p104, %p105
      %p107 = scmp.ne.s32.totalorder %s98, %s99
      %p108 = scmp.eq.s32.totalorder %s25, 0
      %p109 = por %p107, %p108
      %p110 = scmp.ne.s32.totalorder %s98, %s99
      %p111 = scmp.eq.s32.totalorder %s26, 1
      %p112 = por %p110, %p111
      %p114 = scmp.ne.s32.totalorder %s99, %s113
      %p115 = scmp.eq.s32.totalorder %s26, 0
      %p116 = por %p114, %p115
      %s118 = sadd.s32 %s117, 1
      %p121 = scmp.eq.s32.totalorder %s20, 1
      %p122 = scmp.ne.s32.totalorder %s117, %s119
      %p123 = scmp.eq.s32.totalorder %s20, 0
      %p124 = por %p122, %p123
      %p125 = scmp.ne.s32.totalorder %s117, %s119
      %p126 = scmp.eq.s32.totalorder %s25, 1
      %p127 = por %p125, %p126
      %p128 = scmp.ne.s32.totalorder %s119, %s120
      %p129 = scmp.eq.s32.totalorder %s25, 0
      %p130 = por %p128, %p129
      %p131 = scmp.ne.s32.totalorder %s119, %s120
      %p132 = scmp.eq.s32.totalorder %s26, 1
      %p133 = por %p131, %p132
      %p135 = scmp.ne.s32.totalorder %s120, %s134
      %p136 = scmp.eq.s32.totalorder %s26, 0
      %p137 = por %p135, %p136
      %s139 = sadd.s32 %s138, 1
      %p142 = scmp.eq.s32.totalorder %s20, 1
      %p143 = scmp.ne.s32.totalorder %s138, %s140
      %p144 = scmp.eq.s32.totalorder %s20, 0
      %p145 = por %p143, %p144
      %p146 = scmp.ne.s32.totalorder %s138, %s140
      %p147 = scmp.eq.s32.totalorder %s25, 1
      %p148 = por %p146, %p147
      %p149 = scmp.ne.s32.totalorder %s140, %s141
      %p150 = scmp.eq.s32.totalorder %s25, 0
      %p151 = por %p149, %p150
      %p152 = scmp.ne.s32.totalorder %s140, %s141
      %p153 = scmp.eq.s32.totalorder %s26, 1
      %p154 = por %p152, %p153
      %p156 = scmp.ne.s32.totalorder %s141, %s155
      %p157 = scmp.eq.s32.totalorder %s26, 0
      %p158 = por %p156, %p157
      %s160 = sadd.s32 %s159, 1
      %p163 = scmp.eq.s32.totalorder %s20, 1
      %p164 = scmp.ne.s32.totalorder %s159, %s161
      %p165 = scmp.eq.s32.totalorder %s20, 0
      %p166 = por %p164, %p165
      %p167 = scmp.ne.s32.totalorder %s159, %s161
      %p168 = scmp.eq.s32.totalorder %s25, 1
      %p169 = por %p167, %p168
      %p170 = scmp.ne.s32.totalorder %s161, %s162
      %p171 = scmp.eq.s32.totalorder %s25, 0
      %p172 = por %p170, %p171
      %p173 = scmp.ne.s32.totalorder %s161, %s162
      %p174 = scmp.eq.s32.totalorder %s26, 1
      %p175 = por %p173, %p174
      %p177 = scmp.ne.s32.totalorder %s162, %s176
      %p178 = scmp.eq.s32.totalorder %s26, 0
      %p179 = por %p177, %p178
      %s181 = sadd.s32 %s180, 1
      %p184 = scmp.eq.s32.totalorder %s20, 1
      %p185 = scmp.ne.s32.totalorder %s180, %s182
      %p186 = scmp.eq.s32.totalorder %s20, 0
      %p187 = por %p185, %p186
      %p188 = scmp.ne.s32.totalorder %s180, %s182
      %p189 = scmp.eq.s32.totalorder %s25, 1
      %p190 = por %p188, %p189
      %p191 = scmp.ne.s32.totalorder %s182, %s183
      %p192 = scmp.eq.s32.totalorder %s25, 0
      %p193 = por %p191, %p192
      %p194 = scmp.ne.s32.totalorder %s182, %s183
      %p195 = scmp.eq.s32.totalorder %s26, 1
      %p196 = por %p194, %p195
      %p198 = scmp.ne.s32.totalorder %s183, %s197
      %p199 = scmp.eq.s32.totalorder %s26, 0
      %p200 = por %p198, %p199
      %s202 = sadd.s32 %s201, 1
      %p205 = scmp.eq.s32.totalorder %s20, 1
      %p206 = scmp.ne.s32.totalorder %s201, %s203
      %p207 = scmp.eq.s32.totalorder %s20, 0
      %p208 = por %p206, %p207
      %p209 = scmp.ne.s32.totalorder %s201, %s203
      %p210 = scmp.eq.s32.totalorder %s25, 1
      %p211 = por %p209, %p210
      %p212 = scmp.ne.s32.totalorder %s203, %s204
      %p213 = scmp.eq.s32.totalorder %s25, 0
      %p214 = por %p212, %p213
      %p215 = scmp.ne.s32.totalorder %s203, %s204
      %p216 = scmp.eq.s32.totalorder %s26, 1
      %p217 = por %p215, %p216
      %p219 = scmp.ne.s32.totalorder %s204, %s218
      %p220 = scmp.eq.s32.totalorder %s26, 0
      %p221 = por %p219, %p220
      %s222 = ssub.s32 %s20, %s27
      %p223 = scmp.eq.s32.totalorder %s222, 0
      %s225 = sadd.s32 %s224, 1
      %s226 = scalar_select %p223, %s224, %s225
      %p229 = pneg %p223
      %p230 = scmp.eq.s32.totalorder %s20, 1
      %p231 = por %p229, %p230
      %p232 = scmp.ne.s32.totalorder %s224, %s227
      %p233 = scmp.eq.s32.totalorder %s20, 0
      %p234 = por %p232, %p233
      %p235 = scmp.ne.s32.totalorder %s224, %s227
      %p236 = scmp.eq.s32.totalorder %s25, 1
      %p237 = por %p235, %p236
      %p238 = scmp.ne.s32.totalorder %s227, %s228
      %p239 = scmp.eq.s32.totalorder %s25, 0
      %p240 = por %p238, %p239
      %p241 = scmp.ne.s32.totalorder %s227, %s228
      %p242 = scmp.eq.s32.totalorder %s26, 1
      %p243 = por %p241, %p242
      %p245 = scmp.ne.s32.totalorder %s228, %s244
      %p246 = scmp.eq.s32.totalorder %s26, 0
      %p247 = por %p245, %p246
      %p248 = scmp.le.s32.totalorder 1, %s20
      %p249 = scmp.lt.s32.totalorder %s20, 3
      %p250 = pnand %p248, %p249
      %p251 = pneg %p250
      // Predicated region
      $region9: #{tpu_custom_call.1} parent=5 // pred_check
        _
      $region10: #{tpu_custom_call.1} parent=5 // pred_check_branch
        %253 = sbr.rel (%p250) target = $region12
      $region11: #{tpu_custom_call.1} parent=5 // pred_region
        %s254 = ssub.s32 %s20, 1
        // Predicated region
        $region13: #{tpu_custom_call.1} parent=11 // pred_check
          %p255 = pneg %p67
        $region14: #{tpu_custom_call.1} parent=11 // pred_check_branch
          %257 = sbr.rel (%p255) target = $region16
        $region15: #{tpu_custom_call.1} parent=11 // pred_region
          _
        $region16: #{tpu_custom_call.1} parent=11 // pred_fallthru
          _
        // Predicated region
        $region17: #{tpu_custom_call.1} parent=11 // pred_check
          %p258 = pneg %p88
        $region18: #{tpu_custom_call.1} parent=11 // pred_check_branch
          %260 = sbr.rel (%p258) target = $region20
        $region19: #{tpu_custom_call.1} parent=11 // pred_region
          _
        $region20: #{tpu_custom_call.1} parent=11 // pred_fallthru
          _
        // Predicated region
        $region21: #{tpu_custom_call.1} parent=11 // pred_check
          %p261 = pneg %p109
        $region22: #{tpu_custom_call.1} parent=11 // pred_check_branch
          %263 = sbr.rel (%p261) target = $region24
        $region23: #{tpu_custom_call.1} parent=11 // pred_region
          %265 = vsyncadd [#allocation3], 0
          %s266 = sshll.u32 %s3, 4
          %s267 = int_to_ptr.hbm [resolvable:$true] %s266
          %s268 = sshll.u32 [#allocation2], 4
          %s269 = int_to_ptr.vmem [resolvable:$true] %s268
          %274 = dma.hbm_to_vmem [thread:$0]  %s267, 4096, %s269, [#allocation3], 128, 128, 8
        $region24: #{tpu_custom_call.1} parent=11 // pred_fallthru
          _
        // Predicated region
        $region25: #{tpu_custom_call.1} parent=11 // pred_check
          %p275 = pneg %p130
        $region26: #{tpu_custom_call.1} parent=11 // pred_check_branch
          %277 = sbr.rel (%p275) target = $region28
        $region27: #{tpu_custom_call.1} parent=11 // pred_region
          _
        $region28: #{tpu_custom_call.1} parent=11 // pred_fallthru
          _
        // Predicated region
        $region29: #{tpu_custom_call.1} parent=11 // pred_check
          %p278 = pneg %p151
        $region30: #{tpu_custom_call.1} parent=11 // pred_check_branch
          %280 = sbr.rel (%p278) target = $region32
        $region31: #{tpu_custom_call.1} parent=11 // pred_region
          %282 = vsyncadd [#allocation6], 0
          %s283 = sshll.u32 %s5, 4
          %s284 = int_to_ptr.hbm [resolvable:$true] %s283
          %s285 = sshll.u32 [#allocation5], 4
          %s286 = int_to_ptr.vmem [resolvable:$true] %s285
          %291 = dma.hbm_to_vmem [thread:$0]  %s284, 4096, %s286, [#allocation6], 128, 128, 8
        $region32: #{tpu_custom_call.1} parent=11 // pred_fallthru
          _
        // Predicated region
        $region33: #{tpu_custom_call.1} parent=11 // pred_check
          %p292 = pneg %p172
        $region34: #{tpu_custom_call.1} parent=11 // pred_check_branch
          %294 = sbr.rel (%p292) target = $region36
        $region35: #{tpu_custom_call.1} parent=11 // pred_region
          _
        $region36: #{tpu_custom_call.1} parent=11 // pred_fallthru
          _
        // Predicated region
        $region37: #{tpu_custom_call.1} parent=11 // pred_check
          %p295 = pneg %p193
        $region38: #{tpu_custom_call.1} parent=11 // pred_check_branch
          %297 = sbr.rel (%p295) target = $region40
        $region39: #{tpu_custom_call.1} parent=11 // pred_region
          %299 = vsyncadd [#allocation6], 0
          %s300 = sshll.u32 %s7, 4
          %s301 = int_to_ptr.hbm [resolvable:$true] %s300
          %s302 = sshll.u32 [#allocation7], 4
          %s303 = int_to_ptr.vmem [resolvable:$true] %s302
          %308 = dma.hbm_to_vmem [thread:$0]  %s301, 2048, %s303, [#allocation6], 64, 64, 4
        $region40: #{tpu_custom_call.1} parent=11 // pred_fallthru
          _
        // Predicated region
        $region41: #{tpu_custom_call.1} parent=11 // pred_check
          %p309 = pneg %p214
        $region42: #{tpu_custom_call.1} parent=11 // pred_check_branch
          %311 = sbr.rel (%p309) target = $region44
        $region43: #{tpu_custom_call.1} parent=11 // pred_region
          _
        $region44: #{tpu_custom_call.1} parent=11 // pred_fallthru
          _
      $region12: #{tpu_custom_call.1} parent=5 // pred_fallthru
        _
      %p312 = scmp.lt.s32.totalorder %s20, 2
      // Predicated region
      $region45: #{tpu_custom_call.1} parent=5 // pred_check
        %p313 = pneg %p312
      $region46: #{tpu_custom_call.1} parent=5 // pred_check_branch
        %315 = sbr.rel (%p313) target = $region48
      $region47: #{tpu_custom_call.1} parent=5 // pred_region
        // Predicated region
        $region49: #{tpu_custom_call.1} parent=47 // pred_check
          %p316 = pneg %p40
        $region50: #{tpu_custom_call.1} parent=47 // pred_check_branch
          %318 = sbr.rel (%p316) target = $region52
        $region51: #{tpu_custom_call.1} parent=47 // pred_region
          %s319 = smul.u32 4, %s20
          %p320 = scmp.lt.s32.totalorder %s319, 7
          %s321 = scalar_select %p320, %s319, 7
          %s322 = smul.addr %s321, 8
          %s323 = scalar_lea.vmem %s0, %s322
          %s324 = smul.u32 4, %s20
        $region52: #{tpu_custom_call.1} parent=47 // pred_fallthru
          _
      $region48: #{tpu_custom_call.1} parent=5 // pred_fallthru
        _
      %p325 = scmp.le.s32.totalorder 1, %s20
      %p326 = scmp.lt.s32.totalorder %s20, 3
      %p327 = pnand %p325, %p326
      %p328 = pneg %p327
      // Predicated region
      $region53: #{tpu_custom_call.1} parent=5 // pred_check
        _
      $region54: #{tpu_custom_call.1} parent=5 // pred_check_branch
        %330 = sbr.rel (%p327) target = $region56
      $region55: #{tpu_custom_call.1} parent=5 // pred_region
        %s331 = ssub.s32 %s20, 1
        // Predicated region
        $region57: #{tpu_custom_call.1} parent=55 // pred_check
          %p332 = pneg %p109
        $region58: #{tpu_custom_call.1} parent=55 // pred_check_branch
          %334 = sbr.rel (%p332) target = $region60
        $region59: #{tpu_custom_call.1} parent=55 // pred_region
          %336 = dma.done [#allocation3], 4096
        $region60: #{tpu_custom_call.1} parent=55 // pred_fallthru
          _
        // Predicated region
        $region61: #{tpu_custom_call.1} parent=55 // pred_check
          %p337 = pneg %p151
        $region62: #{tpu_custom_call.1} parent=55 // pred_check_branch
          %339 = sbr.rel (%p337) target = $region64
        $region63: #{tpu_custom_call.1} parent=55 // pred_region
          %341 = dma.done [#allocation6], 4096
        $region64: #{tpu_custom_call.1} parent=55 // pred_fallthru
          _
        // Predicated region
        $region65: #{tpu_custom_call.1} parent=55 // pred_check
          %p342 = pneg %p193
        $region66: #{tpu_custom_call.1} parent=55 // pred_check_branch
          %344 = sbr.rel (%p342) target = $region68
        $region67: #{tpu_custom_call.1} parent=55 // pred_region
          %346 = dma.done [#allocation6], 2048
        $region68: #{tpu_custom_call.1} parent=55 // pred_fallthru
          _
        %s347 = smul.u32 4, %s25
        %p348 = scmp.lt.s32.totalorder %s347, 7
        %s349 = scalar_select %p348, %s347, 7
        %s350 = smul.addr %s349, 8
        %s351 = scalar_lea.vmem %s0, %s350
        %p352 = pneg %p46
        %p353 = pneg %p43
        %p354 = pneg %p67
        %p355 = pneg %p64
        %p356 = pneg %p88
        %p357 = pneg %p85
        %p358 = pneg %p109
        %p359 = pneg %p106
        %p360 = pneg %p130
        %p361 = pneg %p127
        %p362 = pneg %p151
        %p363 = pneg %p148
        %p364 = pneg %p172
        %p365 = pneg %p169
        %p366 = pneg %p193
        %p367 = pneg %p190
        %p368 = pneg %p214
        %p369 = pneg %p211
        %p370 = pneg %p240
        %p371 = pneg %p237
        %s372 = sand.u32 %s227, 1
        %s373 = scalar_lea.sflag [#allocation4], %s372
        %s374 = sand.u32 %s227, 1
        %s375 = smul.addr %s374, 32
        %s376 = scalar_lea.vmem [#allocation8], %s375
        %s377 = smul.u32 4, %s25
        %p378 = scmp.lt.s32.totalorder %s377, 7
        %s379 = scalar_select %p378, %s377, 7
        %s380 = smul.addr %s379, 8
        %s381 = scalar_lea.vmem %s0, %s380
        %s382 = smul.u32 4, %s25
        %s383 = smul.u32 4, %s25
        %v385 = vld [vmem:[%s381] sm:$0xff]
        %v386 = vld [vmem:[%s381 + $0x8] sm:$0xff]
        %v387 = vld [vmem:[%s381 + $0x10] sm:$0xff]
        %v388 = vld [vmem:[%s381 + $0x18] sm:$0xff]
        %v389 = vpack.c.bf16 %v386, %v385
        %v390 = vpack.c.bf16 %v388, %v387
        %v391 = vld [vmem:[%s1] sm:$0xff]
        %v392 = vld [vmem:[%s1 + $0x8] sm:$0xff]
        %v393 = vld [vmem:[%s1 + $0x10] sm:$0xff]
        %v394 = vld [vmem:[%s2] sm:$0x3]
        %v396 = vperm.slane %v394, 0
        %v397 = vperm.slane %v394, 1
        %v403 = vunpack.c.l.b16 %v391
        %v404 = vunpack.c.h.b16 %v391
        %v405 = vunpack.c.l.b16 %v392
        %v406 = vunpack.c.h.b16 %v392
        %v407 = vunpack.c.l.b16 %v393
        %v408 = vunpack.c.h.b16 %v393
        %v409 = vpack.c.b16 %v405, %v403
        %v410 = vpack.c.b16 %v406, %v404
        %v411 = vpack.c.b16 %v407, %v407
        %v412 = vpack.c.b16 %v408, %v408
        %vm415 = vcmask 187392
        %v417 = vsel %vm415, %v389, 0
        %v420 = vsel %vm415, %v390, 0
        %vm422 = vcmask 1042432
        %vm423 = vcmask 1043456
        %v424 = vsel %vm422, 4294967295, 65535
        %v425 = vsel %vm423, %v424, 0
        %v427 = vand.u32 %v411, %v425
        %v430 = vand.u32 %v412, %v425
        %432 = vmatpush.bf16.msra.mxu0 0
        %433 = vmatpush.bf16.msra.mxu0 0
        %434 = vmatpush.bf16.msra.mxu0 0
        %435 = vmatpush.bf16.msra.mxu0 0
        %436 = vmatpush.bf16.msra.mxu0 0
        %437 = vmatpush.bf16.msra.mxu0 0
        %438 = vmatpush.bf16.msra.mxu0 %v427
        %439 = vmatpush.bf16.msra.mxu0 %v409
        %440 = vmatmul.bf16.gmra.mxu0 %v417
        %v441 = vpop.f32.mrf.mxu0
        %v442 = vadd.f32 %v396, %v441
        %v443 = vpop.f32.mrf.mxu0
        %v444 = vadd.f32 %v396, %v443
        %445 = vmatmul.bf16.gmra.mxu0 %v420
        %v446 = vpop.f32.mrf.mxu0
        %v447 = vadd.f32 %v396, %v446
        %v448 = vpop.f32.mrf.mxu0
        %v449 = vadd.f32 %v396, %v448
        %450 = vdwg.mxu0
        %451 = vmatpush.bf16.msra.mxu0 0
        %452 = vmatpush.bf16.msra.mxu0 0
        %453 = vmatpush.bf16.msra.mxu0 0
        %454 = vmatpush.bf16.msra.mxu0 0
        %455 = vmatpush.bf16.msra.mxu0 0
        %456 = vmatpush.bf16.msra.mxu0 0
        %457 = vmatpush.bf16.msra.mxu0 %v430
        %458 = vmatpush.bf16.msra.mxu0 %v410
        %459 = vmatmul.bf16.gmra.mxu0 %v417
        %v460 = vpop.f32.mrf.mxu0
        %v461 = vadd.f32 %v397, %v460
        %v462 = vpop.f32.mrf.mxu0
        %v463 = vadd.f32 %v397, %v462
        %464 = vmatmul.bf16.gmra.mxu0 %v420
        %v465 = vpop.f32.mrf.mxu0
        %v466 = vadd.f32 %v397, %v465
        %v467 = vpop.f32.mrf.mxu0
        %v468 = vadd.f32 %v397, %v467
        %469 = vdwg.mxu0
        %v470 = vpack.c.bf16 %v461, %v442
        %v471 = vpack.c.bf16 %v463, %v444
        %v472 = vpack.c.bf16 %v466, %v447
        %v473 = vpack.c.bf16 %v468, %v449
        %v474 = vunpack.c.l.bf16 %v470
        %v475 = vunpack.c.h.bf16 %v470
        %v476 = vunpack.c.l.bf16 %v471
        %v477 = vunpack.c.h.bf16 %v471
        %v478 = vunpack.c.l.bf16 %v472
        %v479 = vunpack.c.h.bf16 %v472
        %v480 = vunpack.c.l.bf16 %v473
        %v481 = vunpack.c.h.bf16 %v473
        %v482 = vmax.f32 %v474, 0.0
        %v483 = vmax.f32 %v475, 0.0
        %v484 = vmax.f32 %v476, 0.0
        %v485 = vmax.f32 %v477, 0.0
        %v486 = vmax.f32 %v478, 0.0
        %v487 = vmax.f32 %v479, 0.0
        %v488 = vmax.f32 %v480, 0.0
        %v489 = vmax.f32 %v481, 0.0
        %v490 = vpack.c.bf16 %v484, %v482
        %v491 = vpack.c.bf16 %v485, %v483
        %v492 = vpack.c.bf16 %v488, %v486
        %v493 = vpack.c.bf16 %v489, %v487
        %v494 = vld [vmem:[#allocation2] sm:$0xff]
        %v495 = vld [vmem:[#allocation2 + $0x8] sm:$0xff]
        %v496 = vld [vmem:[#allocation2 + $0x10] sm:$0xff]
        %v497 = vld [vmem:[#allocation2 + $0x18] sm:$0xff]
        %v498 = vld [vmem:[#allocation2 + $0x20] sm:$0xff]
        %v499 = vld [vmem:[#allocation2 + $0x28] sm:$0xff]
        %v500 = vld [vmem:[#allocation2 + $0x30] sm:$0xff]
        %v501 = vld [vmem:[#allocation2 + $0x38] sm:$0xff]
        %v502 = vld [vmem:[#allocation2 + $0x40] sm:$0xff]
        %v503 = vld [vmem:[#allocation2 + $0x48] sm:$0xff]
        %v504 = vld [vmem:[#allocation2 + $0x50] sm:$0xff]
        %v505 = vld [vmem:[#allocation2 + $0x58] sm:$0xff]
        %v506 = vld [vmem:[#allocation2 + $0x60] sm:$0xff]
        %v507 = vld [vmem:[#allocation2 + $0x68] sm:$0xff]
        %v508 = vld [vmem:[#allocation2 + $0x70] sm:$0xff]
        %v509 = vld [vmem:[#allocation2 + $0x78] sm:$0xff]
        %v510 = vld [vmem:[#allocation2 + $0x80] sm:$0xff]
        %v511 = vld [vmem:[#allocation2 + $0x88] sm:$0xff]
        %v512 = vld [vmem:[#allocation2 + $0x90] sm:$0xff]
        %v513 = vld [vmem:[#allocation2 + $0x98] sm:$0xff]
        %v514 = vld [vmem:[#allocation2 + $0xa0] sm:$0xff]
        %v515 = vld [vmem:[#allocation2 + $0xa8] sm:$0xff]
        %v516 = vld [vmem:[#allocation2 + $0xb0] sm:$0xff]
        %v517 = vld [vmem:[#allocation2 + $0xb8] sm:$0xff]
        %v518 = vld [vmem:[#allocation2 + $0xc0] sm:$0xff]
        %v519 = vld [vmem:[#allocation2 + $0xc8] sm:$0xff]
        %v520 = vld [vmem:[#allocation2 + $0xd0] sm:$0xff]
        %v521 = vld [vmem:[#allocation2 + $0xd8] sm:$0xff]
        %v522 = vld [vmem:[#allocation2 + $0xe0] sm:$0xff]
        %v523 = vld [vmem:[#allocation2 + $0xe8] sm:$0xff]
        %v524 = vld [vmem:[#allocation2 + $0xf0] sm:$0xff]
        %v525 = vld [vmem:[#allocation2 + $0xf8] sm:$0xff]
        %v526 = vld [vmem:[%s4] sm:$0x3]
        %v528 = vperm.slane %v526, 0
        %v529 = vperm.slane %v526, 1
        %v564 = vunpack.c.l.b16 %v494
        %v565 = vunpack.c.h.b16 %v494
        %v566 = vunpack.c.l.b16 %v495
        %v567 = vunpack.c.h.b16 %v495
        %v568 = vunpack.c.l.b16 %v496
        %v569 = vunpack.c.h.b16 %v496
        %v570 = vunpack.c.l.b16 %v497
        %v571 = vunpack.c.h.b16 %v497
        %v572 = vunpack.c.l.b16 %v498
        %v573 = vunpack.c.h.b16 %v498
        %v574 = vunpack.c.l.b16 %v499
        %v575 = vunpack.c.h.b16 %v499
        %v576 = vunpack.c.l.b16 %v500
        %v577 = vunpack.c.h.b16 %v500
        %v578 = vunpack.c.l.b16 %v501
        %v579 = vunpack.c.h.b16 %v501
        %v580 = vunpack.c.l.b16 %v502
        %v581 = vunpack.c.h.b16 %v502
        %v582 = vunpack.c.l.b16 %v503
        %v583 = vunpack.c.h.b16 %v503
        %v584 = vunpack.c.l.b16 %v504
        %v585 = vunpack.c.h.b16 %v504
        %v586 = vunpack.c.l.b16 %v505
        %v587 = vunpack.c.h.b16 %v505
        %v588 = vunpack.c.l.b16 %v506
        %v589 = vunpack.c.h.b16 %v506
        %v590 = vunpack.c.l.b16 %v507
        %v591 = vunpack.c.h.b16 %v507
        %v592 = vunpack.c.l.b16 %v508
        %v593 = vunpack.c.h.b16 %v508
        %v594 = vunpack.c.l.b16 %v509
        %v595 = vunpack.c.h.b16 %v509
        %v596 = vunpack.c.l.b16 %v510
        %v597 = vunpack.c.h.b16 %v510
        %v598 = vunpack.c.l.b16 %v511
        %v599 = vunpack.c.h.b16 %v511
        %v600 = vunpack.c.l.b16 %v512
        %v601 = vunpack.c.h.b16 %v512
        %v602 = vunpack.c.l.b16 %v513
        %v603 = vunpack.c.h.b16 %v513
        %v604 = vunpack.c.l.b16 %v514
        %v605 = vunpack.c.h.b16 %v514
        %v606 = vunpack.c.l.b16 %v515
        %v607 = vunpack.c.h.b16 %v515
        %v608 = vunpack.c.l.b16 %v516
        %v609 = vunpack.c.h.b16 %v516
        %v610 = vunpack.c.l.b16 %v517
        %v611 = vunpack.c.h.b16 %v517
        %v612 = vunpack.c.l.b16 %v518
        %v613 = vunpack.c.h.b16 %v518
        %v614 = vunpack.c.l.b16 %v519
        %v615 = vunpack.c.h.b16 %v519
        %v616 = vunpack.c.l.b16 %v520
        %v617 = vunpack.c.h.b16 %v520
        %v618 = vunpack.c.l.b16 %v521
        %v619 = vunpack.c.h.b16 %v521
        %v620 = vunpack.c.l.b16 %v522
        %v621 = vunpack.c.h.b16 %v522
        %v622 = vunpack.c.l.b16 %v523
        %v623 = vunpack.c.h.b16 %v523
        %v624 = vunpack.c.l.b16 %v524
        %v625 = vunpack.c.h.b16 %v524
        %v626 = vunpack.c.l.b16 %v525
        %v627 = vunpack.c.h.b16 %v525
        %v628 = vpack.c.b16 %v566, %v564
        %v629 = vpack.c.b16 %v567, %v565
        %v630 = vpack.c.b16 %v570, %v568
        %v631 = vpack.c.b16 %v571, %v569
        %v632 = vpack.c.b16 %v574, %v572
        %v633 = vpack.c.b16 %v575, %v573
        %v634 = vpack.c.b16 %v578, %v576
        %v635 = vpack.c.b16 %v579, %v577
        %v636 = vpack.c.b16 %v582, %v580
        %v637 = vpack.c.b16 %v583, %v581
        %v638 = vpack.c.b16 %v586, %v584
        %v639 = vpack.c.b16 %v587, %v585
        %v640 = vpack.c.b16 %v590, %v588
        %v641 = vpack.c.b16 %v591, %v589
        %v642 = vpack.c.b16 %v594, %v592
        %v643 = vpack.c.b16 %v595, %v593
        %v644 = vpack.c.b16 %v598, %v596
        %v645 = vpack.c.b16 %v599, %v597
        %v646 = vpack.c.b16 %v602, %v600
        %v647 = vpack.c.b16 %v603, %v601
        %v648 = vpack.c.b16 %v606, %v604
        %v649 = vpack.c.b16 %v607, %v605
        %v650 = vpack.c.b16 %v610, %v608
        %v651 = vpack.c.b16 %v611, %v609
        %v652 = vpack.c.b16 %v614, %v612
        %v653 = vpack.c.b16 %v615, %v613
        %v654 = vpack.c.b16 %v618, %v616
        %v655 = vpack.c.b16 %v619, %v617
        %v656 = vpack.c.b16 %v622, %v620
        %v657 = vpack.c.b16 %v623, %v621
        %v658 = vpack.c.b16 %v626, %v624
        %v659 = vpack.c.b16 %v627, %v625
        %692 = vmatpush.bf16.msra.mxu0 %v642
        %693 = vmatpush.bf16.msra.mxu0 %v640
        %694 = vmatpush.bf16.msra.mxu0 %v638
        %695 = vmatpush.bf16.msra.mxu0 %v636
        %696 = vmatpush.bf16.msra.mxu0 %v634
        %697 = vmatpush.bf16.msra.mxu0 %v632
        %698 = vmatpush.bf16.msra.mxu0 %v630
        %699 = vmatpush.bf16.msra.mxu0 %v628
        %700 = vmatmul.bf16.gmra.mxu0 %v490
        %v701 = vpop.f32.mrf.mxu0
        %v702 = vadd.f32 %v528, %v701
        %v703 = vpop.f32.mrf.mxu0
        %v704 = vadd.f32 %v528, %v703
        %705 = vmatmul.bf16.gmra.mxu0 %v492
        %v706 = vpop.f32.mrf.mxu0
        %v707 = vadd.f32 %v528, %v706
        %v708 = vpop.f32.mrf.mxu0
        %v709 = vadd.f32 %v528, %v708
        %710 = vdwg.mxu0
        %711 = vmatpush.bf16.msra.mxu0 %v658
        %712 = vmatpush.bf16.msra.mxu0 %v656
        %713 = vmatpush.bf16.msra.mxu0 %v654
        %714 = vmatpush.bf16.msra.mxu0 %v652
        %715 = vmatpush.bf16.msra.mxu0 %v650
        %716 = vmatpush.bf16.msra.mxu0 %v648
        %717 = vmatpush.bf16.msra.mxu0 %v646
        %718 = vmatpush.bf16.msra.mxu0 %v644
        %719 = vmatmul.bf16.gmra.mxu0 %v491
        %v720 = vpop.f32.mrf.mxu0
        %v721 = vadd.f32 %v702, %v720
        %v722 = vpop.f32.mrf.mxu0
        %v723 = vadd.f32 %v704, %v722
        %724 = vmatmul.bf16.gmra.mxu0 %v493
        %v725 = vpop.f32.mrf.mxu0
        %v726 = vadd.f32 %v707, %v725
        %v727 = vpop.f32.mrf.mxu0
        %v728 = vadd.f32 %v709, %v727
        %729 = vdwg.mxu0
        %730 = vmatpush.bf16.msra.mxu0 %v643
        %731 = vmatpush.bf16.msra.mxu0 %v641
        %732 = vmatpush.bf16.msra.mxu0 %v639
        %733 = vmatpush.bf16.msra.mxu0 %v637
        %734 = vmatpush.bf16.msra.mxu0 %v635
        %735 = vmatpush.bf16.msra.mxu0 %v633
        %736 = vmatpush.bf16.msra.mxu0 %v631
        %737 = vmatpush.bf16.msra.mxu0 %v629
        %738 = vmatmul.bf16.gmra.mxu0 %v490
        %v739 = vpop.f32.mrf.mxu0
        %v740 = vadd.f32 %v529, %v739
        %v741 = vpop.f32.mrf.mxu0
        %v742 = vadd.f32 %v529, %v741
        %743 = vmatmul.bf16.gmra.mxu0 %v492
        %v744 = vpop.f32.mrf.mxu0
        %v745 = vadd.f32 %v529, %v744
        %v746 = vpop.f32.mrf.mxu0
        %v747 = vadd.f32 %v529, %v746
        %748 = vdwg.mxu0
        %749 = vmatpush.bf16.msra.mxu0 %v659
        %750 = vmatpush.bf16.msra.mxu0 %v657
        %751 = vmatpush.bf16.msra.mxu0 %v655
        %752 = vmatpush.bf16.msra.mxu0 %v653
        %753 = vmatpush.bf16.msra.mxu0 %v651
        %754 = vmatpush.bf16.msra.mxu0 %v649
        %755 = vmatpush.bf16.msra.mxu0 %v647
        %756 = vmatpush.bf16.msra.mxu0 %v645
        %757 = vmatmul.bf16.gmra.mxu0 %v491
        %v758 = vpop.f32.mrf.mxu0
        %v759 = vadd.f32 %v740, %v758
        %v760 = vpop.f32.mrf.mxu0
        %v761 = vadd.f32 %v742, %v760
        %762 = vmatmul.bf16.gmra.mxu0 %v493
        %v763 = vpop.f32.mrf.mxu0
        %v764 = vadd.f32 %v745, %v763
        %v765 = vpop.f32.mrf.mxu0
        %v766 = vadd.f32 %v747, %v765
        %767 = vdwg.mxu0
        %v768 = vpack.c.bf16 %v759, %v721
        %v769 = vpack.c.bf16 %v761, %v723
        %v770 = vpack.c.bf16 %v764, %v726
        %v771 = vpack.c.bf16 %v766, %v728
        %v772 = vunpack.c.l.bf16 %v768
        %v773 = vunpack.c.h.bf16 %v768
        %v774 = vunpack.c.l.bf16 %v769
        %v775 = vunpack.c.h.bf16 %v769
        %v776 = vunpack.c.l.bf16 %v770
        %v777 = vunpack.c.h.bf16 %v770
        %v778 = vunpack.c.l.bf16 %v771
        %v779 = vunpack.c.h.bf16 %v771
        %v780 = vmax.f32 %v772, 0.0
        %v781 = vmax.f32 %v773, 0.0
        %v782 = vmax.f32 %v774, 0.0
        %v783 = vmax.f32 %v775, 0.0
        %v784 = vmax.f32 %v776, 0.0
        %v785 = vmax.f32 %v777, 0.0
        %v786 = vmax.f32 %v778, 0.0
        %v787 = vmax.f32 %v779, 0.0
        %v788 = vpack.c.bf16 %v782, %v780
        %v789 = vpack.c.bf16 %v783, %v781
        %v790 = vpack.c.bf16 %v786, %v784
        %v791 = vpack.c.bf16 %v787, %v785
        %v792 = vld [vmem:[#allocation5] sm:$0xff]
        %v793 = vld [vmem:[#allocation5 + $0x8] sm:$0xff]
        %v794 = vld [vmem:[#allocation5 + $0x10] sm:$0xff]
        %v795 = vld [vmem:[#allocation5 + $0x18] sm:$0xff]
        %v796 = vld [vmem:[#allocation5 + $0x20] sm:$0xff]
        %v797 = vld [vmem:[#allocation5 + $0x28] sm:$0xff]
        %v798 = vld [vmem:[#allocation5 + $0x30] sm:$0xff]
        %v799 = vld [vmem:[#allocation5 + $0x38] sm:$0xff]
        %v800 = vld [vmem:[#allocation5 + $0x40] sm:$0xff]
        %v801 = vld [vmem:[#allocation5 + $0x48] sm:$0xff]
        %v802 = vld [vmem:[#allocation5 + $0x50] sm:$0xff]
        %v803 = vld [vmem:[#allocation5 + $0x58] sm:$0xff]
        %v804 = vld [vmem:[#allocation5 + $0x60] sm:$0xff]
        %v805 = vld [vmem:[#allocation5 + $0x68] sm:$0xff]
        %v806 = vld [vmem:[#allocation5 + $0x70] sm:$0xff]
        %v807 = vld [vmem:[#allocation5 + $0x78] sm:$0xff]
        %v808 = vld [vmem:[#allocation5 + $0x80] sm:$0xff]
        %v809 = vld [vmem:[#allocation5 + $0x88] sm:$0xff]
        %v810 = vld [vmem:[#allocation5 + $0x90] sm:$0xff]
        %v811 = vld [vmem:[#allocation5 + $0x98] sm:$0xff]
        %v812 = vld [vmem:[#allocation5 + $0xa0] sm:$0xff]
        %v813 = vld [vmem:[#allocation5 + $0xa8] sm:$0xff]
        %v814 = vld [vmem:[#allocation5 + $0xb0] sm:$0xff]
        %v815 = vld [vmem:[#allocation5 + $0xb8] sm:$0xff]
        %v816 = vld [vmem:[#allocation5 + $0xc0] sm:$0xff]
        %v817 = vld [vmem:[#allocation5 + $0xc8] sm:$0xff]
        %v818 = vld [vmem:[#allocation5 + $0xd0] sm:$0xff]
        %v819 = vld [vmem:[#allocation5 + $0xd8] sm:$0xff]
        %v820 = vld [vmem:[#allocation5 + $0xe0] sm:$0xff]
        %v821 = vld [vmem:[#allocation5 + $0xe8] sm:$0xff]
        %v822 = vld [vmem:[#allocation5 + $0xf0] sm:$0xff]
        %v823 = vld [vmem:[#allocation5 + $0xf8] sm:$0xff]
        %v824 = vld [vmem:[%s6] sm:$0x3]
        %v826 = vperm.slane %v824, 0
        %v827 = vperm.slane %v824, 1
        %v862 = vunpack.c.l.b16 %v792
        %v863 = vunpack.c.h.b16 %v792
        %v864 = vunpack.c.l.b16 %v793
        %v865 = vunpack.c.h.b16 %v793
        %v866 = vunpack.c.l.b16 %v794
        %v867 = vunpack.c.h.b16 %v794
        %v868 = vunpack.c.l.b16 %v795
        %v869 = vunpack.c.h.b16 %v795
        %v870 = vunpack.c.l.b16 %v796
        %v871 = vunpack.c.h.b16 %v796
        %v872 = vunpack.c.l.b16 %v797
        %v873 = vunpack.c.h.b16 %v797
        %v874 = vunpack.c.l.b16 %v798
        %v875 = vunpack.c.h.b16 %v798
        %v876 = vunpack.c.l.b16 %v799
        %v877 = vunpack.c.h.b16 %v799
        %v878 = vunpack.c.l.b16 %v800
        %v879 = vunpack.c.h.b16 %v800
        %v880 = vunpack.c.l.b16 %v801
        %v881 = vunpack.c.h.b16 %v801
        %v882 = vunpack.c.l.b16 %v802
        %v883 = vunpack.c.h.b16 %v802
        %v884 = vunpack.c.l.b16 %v803
        %v885 = vunpack.c.h.b16 %v803
        %v886 = vunpack.c.l.b16 %v804
        %v887 = vunpack.c.h.b16 %v804
        %v888 = vunpack.c.l.b16 %v805
        %v889 = vunpack.c.h.b16 %v805
        %v890 = vunpack.c.l.b16 %v806
        %v891 = vunpack.c.h.b16 %v806
        %v892 = vunpack.c.l.b16 %v807
        %v893 = vunpack.c.h.b16 %v807
        %v894 = vunpack.c.l.b16 %v808
        %v895 = vunpack.c.h.b16 %v808
        %v896 = vunpack.c.l.b16 %v809
        %v897 = vunpack.c.h.b16 %v809
        %v898 = vunpack.c.l.b16 %v810
        %v899 = vunpack.c.h.b16 %v810
        %v900 = vunpack.c.l.b16 %v811
        %v901 = vunpack.c.h.b16 %v811
        %v902 = vunpack.c.l.b16 %v812
        %v903 = vunpack.c.h.b16 %v812
        %v904 = vunpack.c.l.b16 %v813
        %v905 = vunpack.c.h.b16 %v813
        %v906 = vunpack.c.l.b16 %v814
        %v907 = vunpack.c.h.b16 %v814
        %v908 = vunpack.c.l.b16 %v815
        %v909 = vunpack.c.h.b16 %v815
        %v910 = vunpack.c.l.b16 %v816
        %v911 = vunpack.c.h.b16 %v816
        %v912 = vunpack.c.l.b16 %v817
        %v913 = vunpack.c.h.b16 %v817
        %v914 = vunpack.c.l.b16 %v818
        %v915 = vunpack.c.h.b16 %v818
        %v916 = vunpack.c.l.b16 %v819
        %v917 = vunpack.c.h.b16 %v819
        %v918 = vunpack.c.l.b16 %v820
        %v919 = vunpack.c.h.b16 %v820
        %v920 = vunpack.c.l.b16 %v821
        %v921 = vunpack.c.h.b16 %v821
        %v922 = vunpack.c.l.b16 %v822
        %v923 = vunpack.c.h.b16 %v822
        %v924 = vunpack.c.l.b16 %v823
        %v925 = vunpack.c.h.b16 %v823
        %v926 = vpack.c.b16 %v864, %v862
        %v927 = vpack.c.b16 %v865, %v863
        %v928 = vpack.c.b16 %v868, %v866
        %v929 = vpack.c.b16 %v869, %v867
        %v930 = vpack.c.b16 %v872, %v870
        %v931 = vpack.c.b16 %v873, %v871
        %v932 = vpack.c.b16 %v876, %v874
        %v933 = vpack.c.b16 %v877, %v875
        %v934 = vpack.c.b16 %v880, %v878
        %v935 = vpack.c.b16 %v881, %v879
        %v936 = vpack.c.b16 %v884, %v882
        %v937 = vpack.c.b16 %v885, %v883
        %v938 = vpack.c.b16 %v888, %v886
        %v939 = vpack.c.b16 %v889, %v887
        %v940 = vpack.c.b16 %v892, %v890
        %v941 = vpack.c.b16 %v893, %v891
        %v942 = vpack.c.b16 %v896, %v894
        %v943 = vpack.c.b16 %v897, %v895
        %v944 = vpack.c.b16 %v900, %v898
        %v945 = vpack.c.b16 %v901, %v899
        %v946 = vpack.c.b16 %v904, %v902
        %v947 = vpack.c.b16 %v905, %v903
        %v948 = vpack.c.b16 %v908, %v906
        %v949 = vpack.c.b16 %v909, %v907
        %v950 = vpack.c.b16 %v912, %v910
        %v951 = vpack.c.b16 %v913, %v911
        %v952 = vpack.c.b16 %v916, %v914
        %v953 = vpack.c.b16 %v917, %v915
        %v954 = vpack.c.b16 %v920, %v918
        %v955 = vpack.c.b16 %v921, %v919
        %v956 = vpack.c.b16 %v924, %v922
        %v957 = vpack.c.b16 %v925, %v923
        %990 = vmatpush.bf16.msra.mxu0 %v940
        %991 = vmatpush.bf16.msra.mxu0 %v938
        %992 = vmatpush.bf16.msra.mxu0 %v936
        %993 = vmatpush.bf16.msra.mxu0 %v934
        %994 = vmatpush.bf16.msra.mxu0 %v932
        %995 = vmatpush.bf16.msra.mxu0 %v930
        %996 = vmatpush.bf16.msra.mxu0 %v928
        %997 = vmatpush.bf16.msra.mxu0 %v926
        %998 = vmatmul.bf16.gmra.mxu0 %v788
        %v999 = vpop.f32.mrf.mxu0
        %v1000 = vadd.f32 %v826, %v999
        %v1001 = vpop.f32.mrf.mxu0
        %v1002 = vadd.f32 %v826, %v1001
        %1003 = vmatmul.bf16.gmra.mxu0 %v790
        %v1004 = vpop.f32.mrf.mxu0
        %v1005 = vadd.f32 %v826, %v1004
        %v1006 = vpop.f32.mrf.mxu0
        %v1007 = vadd.f32 %v826, %v1006
        %1008 = vdwg.mxu0
        %1009 = vmatpush.bf16.msra.mxu0 %v956
        %1010 = vmatpush.bf16.msra.mxu0 %v954
        %1011 = vmatpush.bf16.msra.mxu0 %v952
        %1012 = vmatpush.bf16.msra.mxu0 %v950
        %1013 = vmatpush.bf16.msra.mxu0 %v948
        %1014 = vmatpush.bf16.msra.mxu0 %v946
        %1015 = vmatpush.bf16.msra.mxu0 %v944
        %1016 = vmatpush.bf16.msra.mxu0 %v942
        %1017 = vmatmul.bf16.gmra.mxu0 %v789
        %v1018 = vpop.f32.mrf.mxu0
        %v1019 = vadd.f32 %v1000, %v1018
        %v1020 = vpop.f32.mrf.mxu0
        %v1021 = vadd.f32 %v1002, %v1020
        %1022 = vmatmul.bf16.gmra.mxu0 %v791
        %v1023 = vpop.f32.mrf.mxu0
        %v1024 = vadd.f32 %v1005, %v1023
        %v1025 = vpop.f32.mrf.mxu0
        %v1026 = vadd.f32 %v1007, %v1025
        %1027 = vdwg.mxu0
        %1028 = vmatpush.bf16.msra.mxu0 %v941
        %1029 = vmatpush.bf16.msra.mxu0 %v939
        %1030 = vmatpush.bf16.msra.mxu0 %v937
        %1031 = vmatpush.bf16.msra.mxu0 %v935
        %1032 = vmatpush.bf16.msra.mxu0 %v933
        %1033 = vmatpush.bf16.msra.mxu0 %v931
        %1034 = vmatpush.bf16.msra.mxu0 %v929
        %1035 = vmatpush.bf16.msra.mxu0 %v927
        %1036 = vmatmul.bf16.gmra.mxu0 %v788
        %v1037 = vpop.f32.mrf.mxu0
        %v1038 = vadd.f32 %v827, %v1037
        %v1039 = vpop.f32.mrf.mxu0
        %v1040 = vadd.f32 %v827, %v1039
        %1041 = vmatmul.bf16.gmra.mxu0 %v790
        %v1042 = vpop.f32.mrf.mxu0
        %v1043 = vadd.f32 %v827, %v1042
        %v1044 = vpop.f32.mrf.mxu0
        %v1045 = vadd.f32 %v827, %v1044
        %1046 = vdwg.mxu0
        %1047 = vmatpush.bf16.msra.mxu0 %v957
        %1048 = vmatpush.bf16.msra.mxu0 %v955
        %1049 = vmatpush.bf16.msra.mxu0 %v953
        %1050 = vmatpush.bf16.msra.mxu0 %v951
        %1051 = vmatpush.bf16.msra.mxu0 %v949
        %1052 = vmatpush.bf16.msra.mxu0 %v947
        %1053 = vmatpush.bf16.msra.mxu0 %v945
        %1054 = vmatpush.bf16.msra.mxu0 %v943
        %1055 = vmatmul.bf16.gmra.mxu0 %v789
        %v1056 = vpop.f32.mrf.mxu0
        %v1057 = vadd.f32 %v1038, %v1056
        %v1058 = vpop.f32.mrf.mxu0
        %v1059 = vadd.f32 %v1040, %v1058
        %1060 = vmatmul.bf16.gmra.mxu0 %v791
        %v1061 = vpop.f32.mrf.mxu0
        %v1062 = vadd.f32 %v1043, %v1061
        %v1063 = vpop.f32.mrf.mxu0
        %v1064 = vadd.f32 %v1045, %v1063
        %1065 = vdwg.mxu0
        %v1066 = vpack.c.bf16 %v1057, %v1019
        %v1067 = vpack.c.bf16 %v1059, %v1021
        %v1068 = vpack.c.bf16 %v1062, %v1024
        %v1069 = vpack.c.bf16 %v1064, %v1026
        %v1070 = vunpack.c.l.bf16 %v1066
        %v1071 = vunpack.c.h.bf16 %v1066
        %v1072 = vunpack.c.l.bf16 %v1067
        %v1073 = vunpack.c.h.bf16 %v1067
        %v1074 = vunpack.c.l.bf16 %v1068
        %v1075 = vunpack.c.h.bf16 %v1068
        %v1076 = vunpack.c.l.bf16 %v1069
        %v1077 = vunpack.c.h.bf16 %v1069
        %v1078 = vmax.f32 %v1070, 0.0
        %v1079 = vmax.f32 %v1071, 0.0
        %v1080 = vmax.f32 %v1072, 0.0
        %v1081 = vmax.f32 %v1073, 0.0
        %v1082 = vmax.f32 %v1074, 0.0
        %v1083 = vmax.f32 %v1075, 0.0
        %v1084 = vmax.f32 %v1076, 0.0
        %v1085 = vmax.f32 %v1077, 0.0
        %v1086 = vpack.c.bf16 %v1080, %v1078
        %v1087 = vpack.c.bf16 %v1081, %v1079
        %v1088 = vpack.c.bf16 %v1084, %v1082
        %v1089 = vpack.c.bf16 %v1085, %v1083
        %v1090 = vld [vmem:[#allocation7] sm:$0xf]
        %v1091 = vld [vmem:[#allocation7 + $0x4] sm:$0xf]
        %v1092 = vld [vmem:[#allocation7 + $0x8] sm:$0xf]
        %v1093 = vld [vmem:[#allocation7 + $0xc] sm:$0xf]
        %v1094 = vld [vmem:[#allocation7 + $0x10] sm:$0xf]
        %v1095 = vld [vmem:[#allocation7 + $0x14] sm:$0xf]
        %v1096 = vld [vmem:[#allocation7 + $0x18] sm:$0xf]
        %v1097 = vld [vmem:[#allocation7 + $0x1c] sm:$0xf]
        %v1098 = vld [vmem:[#allocation7 + $0x20] sm:$0xf]
        %v1099 = vld [vmem:[#allocation7 + $0x24] sm:$0xf]
        %v1100 = vld [vmem:[#allocation7 + $0x28] sm:$0xf]
        %v1101 = vld [vmem:[#allocation7 + $0x2c] sm:$0xf]
        %v1102 = vld [vmem:[#allocation7 + $0x30] sm:$0xf]
        %v1103 = vld [vmem:[#allocation7 + $0x34] sm:$0xf]
        %v1104 = vld [vmem:[#allocation7 + $0x38] sm:$0xf]
        %v1105 = vld [vmem:[#allocation7 + $0x3c] sm:$0xf]
        %v1106 = vld [vmem:[#allocation7 + $0x40] sm:$0xf]
        %v1107 = vld [vmem:[#allocation7 + $0x44] sm:$0xf]
        %v1108 = vld [vmem:[#allocation7 + $0x48] sm:$0xf]
        %v1109 = vld [vmem:[#allocation7 + $0x4c] sm:$0xf]
        %v1110 = vld [vmem:[#allocation7 + $0x50] sm:$0xf]
        %v1111 = vld [vmem:[#allocation7 + $0x54] sm:$0xf]
        %v1112 = vld [vmem:[#allocation7 + $0x58] sm:$0xf]
        %v1113 = vld [vmem:[#allocation7 + $0x5c] sm:$0xf]
        %v1114 = vld [vmem:[#allocation7 + $0x60] sm:$0xf]
        %v1115 = vld [vmem:[#allocation7 + $0x64] sm:$0xf]
        %v1116 = vld [vmem:[#allocation7 + $0x68] sm:$0xf]
        %v1117 = vld [vmem:[#allocation7 + $0x6c] sm:$0xf]
        %v1118 = vld [vmem:[#allocation7 + $0x70] sm:$0xf]
        %v1119 = vld [vmem:[#allocation7 + $0x74] sm:$0xf]
        %v1120 = vld [vmem:[#allocation7 + $0x78] sm:$0xf]
        %v1121 = vld [vmem:[#allocation7 + $0x7c] sm:$0xf]
        %v1122 = vld [vmem:[%s8] sm:$0x1]
        %v1124 = vperm.slane %v1122, 0
        %v1158 = vunpack.c.l.b16 %v1090
        %v1159 = vunpack.c.l.b16 %v1091
        %v1160 = vunpack.c.l.b16 %v1092
        %v1161 = vunpack.c.l.b16 %v1093
        %v1162 = vunpack.c.l.b16 %v1094
        %v1163 = vunpack.c.l.b16 %v1095
        %v1164 = vunpack.c.l.b16 %v1096
        %v1165 = vunpack.c.l.b16 %v1097
        %v1166 = vunpack.c.l.b16 %v1098
        %v1167 = vunpack.c.l.b16 %v1099
        %v1168 = vunpack.c.l.b16 %v1100
        %v1169 = vunpack.c.l.b16 %v1101
        %v1170 = vunpack.c.l.b16 %v1102
        %v1171 = vunpack.c.l.b16 %v1103
        %v1172 = vunpack.c.l.b16 %v1104
        %v1173 = vunpack.c.l.b16 %v1105
        %v1174 = vunpack.c.l.b16 %v1106
        %v1175 = vunpack.c.l.b16 %v1107
        %v1176 = vunpack.c.l.b16 %v1108
        %v1177 = vunpack.c.l.b16 %v1109
        %v1178 = vunpack.c.l.b16 %v1110
        %v1179 = vunpack.c.l.b16 %v1111
        %v1180 = vunpack.c.l.b16 %v1112
        %v1181 = vunpack.c.l.b16 %v1113
        %v1182 = vunpack.c.l.b16 %v1114
        %v1183 = vunpack.c.l.b16 %v1115
        %v1184 = vunpack.c.l.b16 %v1116
        %v1185 = vunpack.c.l.b16 %v1117
        %v1186 = vunpack.c.l.b16 %v1118
        %v1187 = vunpack.c.l.b16 %v1119
        %v1188 = vunpack.c.l.b16 %v1120
        %v1189 = vunpack.c.l.b16 %v1121
        %v1190 = vpack.c.b16 %v1159, %v1158
        %v1191 = vpack.c.b16 %v1161, %v1160
        %v1192 = vpack.c.b16 %v1163, %v1162
        %v1193 = vpack.c.b16 %v1165, %v1164
        %v1194 = vpack.c.b16 %v1167, %v1166
        %v1195 = vpack.c.b16 %v1169, %v1168
        %v1196 = vpack.c.b16 %v1171, %v1170
        %v1197 = vpack.c.b16 %v1173, %v1172
        %v1198 = vpack.c.b16 %v1175, %v1174
        %v1199 = vpack.c.b16 %v1177, %v1176
        %v1200 = vpack.c.b16 %v1179, %v1178
        %v1201 = vpack.c.b16 %v1181, %v1180
        %v1202 = vpack.c.b16 %v1183, %v1182
        %v1203 = vpack.c.b16 %v1185, %v1184
        %v1204 = vpack.c.b16 %v1187, %v1186
        %v1205 = vpack.c.b16 %v1189, %v1188
        %1222 = vmatpush.bf16.msra.mxu0 %v1197
        %1223 = vmatpush.bf16.msra.mxu0 %v1196
        %1224 = vmatpush.bf16.msra.mxu0 %v1195
        %1225 = vmatpush.bf16.msra.mxu0 %v1194
        %1226 = vmatpush.bf16.msra.mxu0 %v1193
        %1227 = vmatpush.bf16.msra.mxu0 %v1192
        %1228 = vmatpush.bf16.msra.mxu0 %v1191
        %1229 = vmatpush.bf16.msra.mxu0 %v1190
        %1230 = vmatmul.bf16.gmra.mxu0 %v1086
        %v1231 = vpop.f32.mrf.mxu0
        %v1232 = vadd.f32 %v1124, %v1231
        %v1233 = vpop.f32.mrf.mxu0
        %v1234 = vadd.f32 %v1124, %v1233
        %1235 = vmatmul.bf16.gmra.mxu0 %v1088
        %v1236 = vpop.f32.mrf.mxu0
        %v1237 = vadd.f32 %v1124, %v1236
        %v1238 = vpop.f32.mrf.mxu0
        %v1239 = vadd.f32 %v1124, %v1238
        %1240 = vdwg.mxu0
        %1241 = vmatpush.bf16.msra.mxu0 %v1205
        %1242 = vmatpush.bf16.msra.mxu0 %v1204
        %1243 = vmatpush.bf16.msra.mxu0 %v1203
        %1244 = vmatpush.bf16.msra.mxu0 %v1202
        %1245 = vmatpush.bf16.msra.mxu0 %v1201
        %1246 = vmatpush.bf16.msra.mxu0 %v1200
        %1247 = vmatpush.bf16.msra.mxu0 %v1199
        %1248 = vmatpush.bf16.msra.mxu0 %v1198
        %1249 = vmatmul.bf16.gmra.mxu0 %v1087
        %v1250 = vpop.f32.mrf.mxu0
        %v1251 = vadd.f32 %v1232, %v1250
        %v1252 = vpop.f32.mrf.mxu0
        %v1253 = vadd.f32 %v1234, %v1252
        %1254 = vmatmul.bf16.gmra.mxu0 %v1089
        %v1255 = vpop.f32.mrf.mxu0
        %v1256 = vadd.f32 %v1237, %v1255
        %v1257 = vpop.f32.mrf.mxu0
        %v1258 = vadd.f32 %v1239, %v1257
        %1259 = vdwg.mxu0
        %1260 = vst [vmem:[%s376] sm:$0xff] %v1251
        %1261 = vst [vmem:[%s376 + $0x8] sm:$0xff] %v1253
        %1262 = vst [vmem:[%s376 + $0x10] sm:$0xff] %v1256
        %1263 = vst [vmem:[%s376 + $0x18] sm:$0xff] %v1258
        %s1264 = sand.u32 %s227, 1
        %s1265 = scalar_lea.sflag [#allocation4], %s1264
        %s1266 = sand.u32 %s227, 1
        %s1267 = smul.addr %s1266, 32
        %s1268 = scalar_lea.vmem [#allocation8], %s1267
        // Predicated region
        $region69: #{tpu_custom_call.1} parent=55 // pred_check
          %p1269 = pneg %p237
        $region70: #{tpu_custom_call.1} parent=55 // pred_check_branch
          %1271 = sbr.rel (%p1269) target = $region72
        $region71: #{tpu_custom_call.1} parent=55 // pred_region
          %s1272 = smul.u32 4, %s25
          %1274 = vsyncadd %s1265, 0
          %s1275 = smul.addr %s1272, 8
          %s1276 = scalar_lea.hbm %s9, %s1275
          %s1277 = sshll.u32 %s1268, 4
          %s1278 = int_to_ptr.vmem [resolvable:$true] %s1277
          %s1279 = sshll.u32 %s1276, 4
          %s1280 = int_to_ptr.hbm [resolvable:$true] %s1279
          %1285 = dma.vmem_to_hbm [thread:$0]  %s1278, 512, %s1280, %s1265, 128, 128, 8
        $region72: #{tpu_custom_call.1} parent=55 // pred_fallthru
          _
      $region56: #{tpu_custom_call.1} parent=5 // pred_fallthru
        _
      %p1286 = scmp.le.s32.totalorder 2, %s20
      // Predicated region
      $region73: #{tpu_custom_call.1} parent=5 // pred_check
        %p1287 = pneg %p1286
      $region74: #{tpu_custom_call.1} parent=5 // pred_check_branch
        %1289 = sbr.rel (%p1287) target = $region76
      $region75: #{tpu_custom_call.1} parent=5 // pred_region
        %s1290 = ssub.s32 %s20, 2
        // Predicated region
        $region77: #{tpu_custom_call.1} parent=75 // pred_check
          %p1291 = pneg %p243
        $region78: #{tpu_custom_call.1} parent=75 // pred_check_branch
          %1293 = sbr.rel (%p1291) target = $region80
        $region79: #{tpu_custom_call.1} parent=75 // pred_region
          %s1294 = sand.u32 %s228, 1
          %s1295 = scalar_lea.sflag [#allocation4], %s1294
          %s1296 = sand.u32 %s228, 1
          %s1297 = smul.addr %s1296, 32
          %s1298 = scalar_lea.vmem [#allocation8], %s1297
          %1300 = dma.done %s1295, 512
        $region80: #{tpu_custom_call.1} parent=75 // pred_fallthru
          _
      $region76: #{tpu_custom_call.1} parent=5 // pred_fallthru
        _
    $region6: #{tpu_custom_call.1} parent=1 // loop_footer
      %s24 = sadd.s32 1, %s20
    $region7: #{tpu_custom_call.1} parent=1 // loop_footer_branch
      %19 = sbr.rel target = $region3
    $region8: #{tpu_custom_call.1} parent=1 // loop_exit
      _
    %1301 = vsyncpa [#allocation3], 1
    %s1302 = scalar_lea.sflag [#allocation3], 1
    %1303 = vsyncpa %s1302, 1
    %1304 = vsyncpa [#allocation6], 1
    %1305 = vsyncpa [#allocation4], 1
    %s1306 = scalar_lea.sflag [#allocation4], 1
    %1307 = vsyncpa %s1306, 1

</llo_original>
